<compile_context>
chip_gen: v7x
topology: tpu7x:2x2x1
jax: 0.10.0
libtpu: 0.0.40
codegen_flags: <defaults>
</compile_context>

<pallas_src>
import functools

import jax
import jax.numpy as jnp
from jax import lax
from jax.experimental import pallas as pl
from jax.experimental.pallas import tpu as pltpu


def _round_up(x, m):
    return (x + m - 1) // m * m


def char_rnn_kernel(x_ref, h0_ref, wih_ref, whh_ref, b_ref, wfc_ref, bfc_ref,
                    out_ref, hid_ref, hist_ref, *, t_block, batch, t_valid):
    """One T-block of the tanh-RNN recurrence + batched output projection.

    x_ref   : (t_block*B, E)   embedded inputs for this T-block (time-major rows)
    h0_ref  : (B, Hp)          initial hidden state (zero-padded to Hp)
    wih_ref : (E, Hp)          input->hidden weight  (pre-transposed, padded)
    whh_ref : (Hp, Hp)         hidden->hidden weight (pre-transposed, padded)
    b_ref   : (1, Hp)          combined bias b_ih + b_hh (padded)
    wfc_ref : (Hp, Vp)         output projection weight (pre-transposed, padded)
    bfc_ref : (1, Vp)          output projection bias (padded)
    out_ref : (t_block*B, Vp)  per-step logits for this T-block (lane-dense)
    hid_ref : (B, Hp)          hidden-state carry across grid steps / final hidden
    hist_ref: (t_block*B, Hp)  VMEM scratch holding the block's hidden history
    """
    i = pl.program_id(0)

    # Hoisted input projection for the whole block: one well-shaped MXU matmul.
    xw = (jnp.dot(x_ref[...], wih_ref[...], preferred_element_type=jnp.float32)
          + b_ref[...])                                     # (t_block*B, Hp)

    @pl.when(i == 0)
    def _():
        hid_ref[...] = h0_ref[...]

    h = hid_ref[...]                                        # (B, Hp) lives in vregs
    whh = whh_ref[...]
    for t in range(t_block):                                # fully unrolled
        x_t = xw[t * batch:(t + 1) * batch, :]              # (B, Hp)
        h_new = jnp.tanh(
            x_t + jnp.dot(h, whh, preferred_element_type=jnp.float32))
        if t_valid is not None:
            # Padded tail timesteps: carry the hidden state through unchanged.
            h_new = jnp.where(i * t_block + t < t_valid, h_new, h)
        h = h_new
        hist_ref[t * batch:(t + 1) * batch, :] = h          # off the serial chain

    hid_ref[...] = h                                        # carry / final hidden

    # Batched FC over all timesteps of this block: one matmul, lane-dense store.
    out_ref[...] = (jnp.dot(hist_ref[...], wfc_ref[...],
                            preferred_element_type=jnp.float32)
                    + bfc_ref[...])


@functools.partial(jax.jit, static_argnames=("t_block",))
def char_rnn_forward(tokens, params, hidden=None, *, t_block=8):
    """tokens: (B, T) int32.  Returns (out (B,T,V), hidden (1,B,H)) like PyTorch."""
    emb_table, w_ih, w_hh, b_ih, b_hh, w_fc, b_fc = params
    B, T = tokens.shape
    V, E = emb_table.shape
    H = w_hh.shape[0]

    Hp = _round_up(H, 128)
    Vp = _round_up(V, 128)
    T_pad = _round_up(T, t_block)
    num_blocks = T_pad // t_block

    # Glue: embedding lookup, time-major fold to a (T_pad*B, E) 2-D slab.
    x = jnp.take(emb_table, tokens, axis=0)                 # (B, T, E)
    x_tm = jnp.transpose(x, (1, 0, 2)).astype(jnp.float32)  # (T, B, E)
    if T_pad != T:
        x_tm = jnp.pad(x_tm, ((0, T_pad - T), (0, 0), (0, 0)))
    x2d = x_tm.reshape(T_pad * B, E)

    if hidden is None:
        h0 = jnp.zeros((B, Hp), jnp.float32)
    else:
        h0 = jnp.pad(hidden.reshape(B, H).astype(jnp.float32),
                     ((0, 0), (0, Hp - H)))

    # Pre-transpose + zero-pad weights to lane-dense (multiple-of-128) shapes.
    # TODO(synk): cast weights/activations to bf16 (f32 accumulation) on v6e/v7x.
    wih_p = jnp.pad(w_ih.T, ((0, 0), (0, Hp - H)))          # (E, Hp)
    whh_p = jnp.pad(w_hh.T, ((0, Hp - H), (0, Hp - H)))     # (Hp, Hp)
    b_p = jnp.pad(b_ih + b_hh, (0, Hp - H))[None, :]        # (1, Hp)
    wfc_p = jnp.pad(w_fc.T, ((0, Hp - H), (0, Vp - V)))     # (Hp, Vp)
    bfc_p = jnp.pad(b_fc, (0, Vp - V))[None, :]             # (1, Vp)

    kernel = functools.partial(
        char_rnn_kernel, t_block=t_block, batch=B,
        t_valid=(T if T_pad != T else None))

    resident = lambda i: (0, 0)   # weights / hidden carry stay in VMEM across grid

    out2d, h_fin = pl.pallas_call(
        kernel,
        out_shape=(
            jax.ShapeDtypeStruct((T_pad * B, Vp), jnp.float32),
            jax.ShapeDtypeStruct((B, Hp), jnp.float32),
        ),
        grid_spec=pltpu.PrefetchScalarGridSpec(
            num_scalar_prefetch=0,
            grid=(num_blocks,),
            in_specs=[
                pl.BlockSpec((t_block * B, E), lambda i: (i, 0)),   # x block
                pl.BlockSpec((B, Hp), resident),                    # h0
                pl.BlockSpec((E, Hp), resident),                    # W_ih^T
                pl.BlockSpec((Hp, Hp), resident),                   # W_hh^T
                pl.BlockSpec((1, Hp), resident),                    # rnn bias
                pl.BlockSpec((Hp, Vp), resident),                   # W_fc^T
                pl.BlockSpec((1, Vp), resident),                    # fc bias
            ],
            out_specs=(
                pl.BlockSpec((t_block * B, Vp), lambda i: (i, 0)),  # logits block
                pl.BlockSpec((B, Hp), resident),                    # hidden carry
            ),
            scratch_shapes=[pltpu.VMEM((t_block * B, Hp), jnp.float32)],
        ),
        compiler_params=pltpu.CompilerParams(
            # Recurrence carries hidden state across T-blocks -> sequential axis.
            dimension_semantics=("arbitrary",),
            vmem_limit_bytes=32 * 1024 * 1024,
        ),
    )(x2d, h0, wih_p, whh_p, b_p, wfc_p, bfc_p)

    # TODO(synk): for large B on v7x, add a leading "parallel" batch grid axis so
    # both TensorCores run independent batch shards of the recurrence.

    out = out2d.reshape(T_pad, B, Vp)[:T, :, :V]            # drop T/V padding
    out = jnp.transpose(out, (1, 0, 2))                     # (B, T, V) batch_first
    hidden_out = h_fin[:, :H][None, :, :]                   # (num_layers=1, B, H)
    return out, hidden_out


def make_params(key, vocab_size, embedding_dim, hidden_dim):
    """Deterministic synthetic parameters matching nn.Embedding/nn.RNN/nn.Linear shapes."""
    ks = jax.random.split(key, 7)
    emb_table = jax.random.normal(ks[0], (vocab_size, embedding_dim), jnp.float32) * 0.1
    w_ih = jax.random.normal(ks[1], (hidden_dim, embedding_dim), jnp.float32) * 0.1
    w_hh = jax.random.normal(ks[2], (hidden_dim, hidden_dim), jnp.float32) * 0.1
    b_ih = jax.random.normal(ks[3], (hidden_dim,), jnp.float32) * 0.1
    b_hh = jax.random.normal(ks[4], (hidden_dim,), jnp.float32) * 0.1
    w_fc = jax.random.normal(ks[5], (vocab_size, hidden_dim), jnp.float32) * 0.1
    b_fc = jax.random.normal(ks[6], (vocab_size,), jnp.float32) * 0.1
    return (emb_table, w_ih, w_hh, b_ih, b_hh, w_fc, b_fc)


def reference_forward(tokens, params, hidden=None):
    """Pure-JAX reference mirroring PyTorch semantics (sanity check)."""
    emb_table, w_ih, w_hh, b_ih, b_hh, w_fc, b_fc = params
    B, T = tokens.shape
    H = w_hh.shape[0]
    x = jnp.take(emb_table, tokens, axis=0)                 # (B, T, E)
    h = jnp.zeros((B, H), jnp.float32) if hidden is None else hidden.reshape(B, H)

    def step(h, x_t):
        h_new = jnp.tanh(x_t @ w_ih.T + b_ih + h @ w_hh.T + b_hh)
        return h_new, h_new

    h_final, hs = lax.scan(step, h, jnp.transpose(x, (1, 0, 2)))
    out = jnp.transpose(hs, (1, 0, 2)) @ w_fc.T + b_fc
    return out, h_final[None]


if __name__ == "__main__":
    vocab_size, embedding_dim, hidden_dim = 64, 32, 32
    batch, seq = 2, 8

    key = jax.random.PRNGKey(0)
    k_params, k_tok = jax.random.split(key)
    params = make_params(k_params, vocab_size, embedding_dim, hidden_dim)
    tokens = jax.random.randint(k_tok, (batch, seq), 0, vocab_size, dtype=jnp.int32)

    out, hidden = char_rnn_forward(tokens, params)
    jax.block_until_ready((out, hidden))

    out_ref, hidden_ref = reference_forward(tokens, params)
    assert out.shape == (batch, seq, vocab_size)
    assert hidden.shape == (1, batch, hidden_dim)
    assert jnp.allclose(out, out_ref, atol=1e-3, rtol=1e-3)
    assert jnp.allclose(hidden, hidden_ref, atol=1e-3, rtol=1e-3)

    print("KERNEL_OK")
</pallas_src>

<mosaic_0001>
module attributes {stable_mosaic.version = 11 : i64} {
  func.func @char_rnn_kernel(%arg0: i32, %arg1: memref<16x32xf32, #tpu.memory_space<vmem>>, %arg2: memref<2x128xf32, #tpu.memory_space<vmem>>, %arg3: memref<32x128xf32, #tpu.memory_space<vmem>>, %arg4: memref<128x128xf32, #tpu.memory_space<vmem>>, %arg5: memref<1x128xf32, #tpu.memory_space<vmem>>, %arg6: memref<128x128xf32, #tpu.memory_space<vmem>>, %arg7: memref<1x128xf32, #tpu.memory_space<vmem>>, %arg8: memref<16x128xf32, #tpu.memory_space<vmem>>, %arg9: memref<2x128xf32, #tpu.memory_space<vmem>>, %arg10: memref<16x128xf32, #tpu.memory_space<vmem>>) attributes {dimension_semantics = [#tpu.dimension_semantics<arbitrary>], iteration_bounds = array<i64: 1>, scalar_prefetch = 0 : i64, scratch_operands = 1 : i64, tpu.core_type = #tpu.core_type<tc>, window_params = [{transform_indices = @transform_0, window_bounds = array<i64: 16, 32>}, {pipeline_mode = #tpu.pipeline_mode<synchronous>, transform_indices = @transform_1, window_bounds = array<i64: 2, 128>}, {pipeline_mode = #tpu.pipeline_mode<synchronous>, transform_indices = @transform_2, window_bounds = array<i64: 32, 128>}, {pipeline_mode = #tpu.pipeline_mode<synchronous>, transform_indices = @transform_3, window_bounds = array<i64: 128, 128>}, {pipeline_mode = #tpu.pipeline_mode<synchronous>, transform_indices = @transform_4, window_bounds = array<i64: 1, 128>}, {pipeline_mode = #tpu.pipeline_mode<synchronous>, transform_indices = @transform_5, window_bounds = array<i64: 128, 128>}, {pipeline_mode = #tpu.pipeline_mode<synchronous>, transform_indices = @transform_6, window_bounds = array<i64: 1, 128>}, {transform_indices = @transform_7, window_bounds = array<i64: 16, 128>}, {pipeline_mode = #tpu.pipeline_mode<synchronous>, transform_indices = @transform_8, window_bounds = array<i64: 2, 128>}]} {
    %c0 = arith.constant 0 : index
    %c0_0 = arith.constant 0 : index
    %0 = vector.load %arg1[%c0, %c0_0] : memref<16x32xf32, #tpu.memory_space<vmem>>, vector<16x32xf32>
    %c0_1 = arith.constant 0 : index
    %c0_2 = arith.constant 0 : index
    %1 = vector.load %arg3[%c0_1, %c0_2] : memref<32x128xf32, #tpu.memory_space<vmem>>, vector<32x128xf32>
    %cst = arith.constant dense<0.000000e+00> : vector<16x128xf32>
    %2 = tpu.matmul %0, %1, %cst {dimension_numbers = #tpu.dot_dimension_numbers<[1], [0], [0], [1], [0, 0, 1, 1], [], []>} : vector<16x32xf32>, vector<32x128xf32>, vector<16x128xf32> -> vector<16x128xf32>
    %c0_3 = arith.constant 0 : index
    %c0_4 = arith.constant 0 : index
    %3 = vector.load %arg5[%c0_3, %c0_4] : memref<1x128xf32, #tpu.memory_space<vmem>>, vector<1x128xf32>
    %4 = vector.broadcast %3 : vector<1x128xf32> to vector<16x128xf32>
    %5 = arith.addf %2, %4 : vector<16x128xf32>
    %c0_i32 = arith.constant 0 : i32
    %6 = arith.cmpi eq, %arg0, %c0_i32 : i32
    %7 = arith.extui %6 : i1 to i32
    %c0_i32_5 = arith.constant 0 : i32
    %8 = arith.cmpi ne, %7, %c0_i32_5 : i32
    scf.if %8 {
      %c0_38 = arith.constant 0 : index
      %c0_39 = arith.constant 0 : index
      %59 = vector.load %arg2[%c0_38, %c0_39] : memref<2x128xf32, #tpu.memory_space<vmem>>, vector<2x128xf32>
      %c0_40 = arith.constant 0 : index
      %c0_41 = arith.constant 0 : index
      %60 = vector.load %arg9[%c0_40, %c0_41] : memref<2x128xf32, #tpu.memory_space<vmem>>, vector<2x128xf32>
      tpu.vector_store %arg9[%c0_40, %c0_41], %59 {strides = array<i32>} : memref<2x128xf32, #tpu.memory_space<vmem>>, vector<2x128xf32>,
    } else {
    }
    %c0_6 = arith.constant 0 : index
    %c0_7 = arith.constant 0 : index
    %9 = vector.load %arg9[%c0_6, %c0_7] : memref<2x128xf32, #tpu.memory_space<vmem>>, vector<2x128xf32>
    %c0_8 = arith.constant 0 : index
    %c0_9 = arith.constant 0 : index
    %10 = vector.load %arg4[%c0_8, %c0_9] : memref<128x128xf32, #tpu.memory_space<vmem>>, vector<128x128xf32>
    %11 = vector.extract_strided_slice %5 {offsets = [0, 0], sizes = [2, 128], strides = [1, 1]} : vector<16x128xf32> to vector<2x128xf32>
    %cst_10 = arith.constant dense<0.000000e+00> : vector<2x128xf32>
    %12 = tpu.matmul %9, %10, %cst_10 {dimension_numbers = #tpu.dot_dimension_numbers<[1], [0], [0], [1], [0, 0, 1, 1], [], []>} : vector<2x128xf32>, vector<128x128xf32>, vector<2x128xf32> -> vector<2x128xf32>
    %13 = arith.addf %11, %12 : vector<2x128xf32>
    %14 = math.tanh %13 : vector<2x128xf32>
    %c0_11 = arith.constant 0 : index
    %c0_12 = arith.constant 0 : index
    %15 = vector.load %arg10[%c0_11, %c0_12] : memref<16x128xf32, #tpu.memory_space<vmem>>, vector<2x128xf32>
    tpu.vector_store %arg10[%c0_11, %c0_12], %14 {strides = array<i32>} : memref<16x128xf32, #tpu.memory_space<vmem>>, vector<2x128xf32>,
    %16 = vector.extract_strided_slice %5 {offsets = [2, 0], sizes = [2, 128], strides = [1, 1]} : vector<16x128xf32> to vector<2x128xf32>
    %cst_13 = arith.constant dense<0.000000e+00> : vector<2x128xf32>
    %17 = tpu.matmul %14, %10, %cst_13 {dimension_numbers = #tpu.dot_dimension_numbers<[1], [0], [0], [1], [0, 0, 1, 1], [], []>} : vector<2x128xf32>, vector<128x128xf32>, vector<2x128xf32> -> vector<2x128xf32>
    %18 = arith.addf %16, %17 : vector<2x128xf32>
    %19 = math.tanh %18 : vector<2x128xf32>
    %c2 = arith.constant 2 : index
    %c0_14 = arith.constant 0 : index
    %20 = vector.load %arg10[%c2, %c0_14] : memref<16x128xf32, #tpu.memory_space<vmem>>, vector<2x128xf32>
    tpu.vector_store %arg10[%c2, %c0_14], %19 {strides = array<i32>} : memref<16x128xf32, #tpu.memory_space<vmem>>, vector<2x128xf32>,
    %21 = vector.extract_strided_slice %5 {offsets = [4, 0], sizes = [2, 128], strides = [1, 1]} : vector<16x128xf32> to vector<2x128xf32>
    %cst_15 = arith.constant dense<0.000000e+00> : vector<2x128xf32>
    %22 = tpu.matmul %19, %10, %cst_15 {dimension_numbers = #tpu.dot_dimension_numbers<[1], [0], [0], [1], [0, 0, 1, 1], [], []>} : vector<2x128xf32>, vector<128x128xf32>, vector<2x128xf32> -> vector<2x128xf32>
    %23 = arith.addf %21, %22 : vector<2x128xf32>
    %24 = math.tanh %23 : vector<2x128xf32>
    %c4 = arith.constant 4 : index
    %c0_16 = arith.constant 0 : index
    %25 = vector.load %arg10[%c4, %c0_16] : memref<16x128xf32, #tpu.memory_space<vmem>>, vector<2x128xf32>
    tpu.vector_store %arg10[%c4, %c0_16], %24 {strides = array<i32>} : memref<16x128xf32, #tpu.memory_space<vmem>>, vector<2x128xf32>,
    %26 = vector.extract_strided_slice %5 {offsets = [6, 0], sizes = [2, 128], strides = [1, 1]} : vector<16x128xf32> to vector<2x128xf32>
    %cst_17 = arith.constant dense<0.000000e+00> : vector<2x128xf32>
    %27 = tpu.matmul %24, %10, %cst_17 {dimension_numbers = #tpu.dot_dimension_numbers<[1], [0], [0], [1], [0, 0, 1, 1], [], []>} : vector<2x128xf32>, vector<128x128xf32>, vector<2x128xf32> -> vector<2x128xf32>
    %28 = arith.addf %26, %27 : vector<2x128xf32>
    %29 = math.tanh %28 : vector<2x128xf32>
    %c6 = arith.constant 6 : index
    %c0_18 = arith.constant 0 : index
    %30 = vector.load %arg10[%c6, %c0_18] : memref<16x128xf32, #tpu.memory_space<vmem>>, vector<2x128xf32>
    tpu.vector_store %arg10[%c6, %c0_18], %29 {strides = array<i32>} : memref<16x128xf32, #tpu.memory_space<vmem>>, vector<2x128xf32>,
    %31 = vector.extract_strided_slice %5 {offsets = [8, 0], sizes = [2, 128], strides = [1, 1]} : vector<16x128xf32> to vector<2x128xf32>
    %cst_19 = arith.constant dense<0.000000e+00> : vector<2x128xf32>
    %32 = tpu.matmul %29, %10, %cst_19 {dimension_numbers = #tpu.dot_dimension_numbers<[1], [0], [0], [1], [0, 0, 1, 1], [], []>} : vector<2x128xf32>, vector<128x128xf32>, vector<2x128xf32> -> vector<2x128xf32>
    %33 = arith.addf %31, %32 : vector<2x128xf32>
    %34 = math.tanh %33 : vector<2x128xf32>
    %c8 = arith.constant 8 : index
    %c0_20 = arith.constant 0 : index
    %35 = vector.load %arg10[%c8, %c0_20] : memref<16x128xf32, #tpu.memory_space<vmem>>, vector<2x128xf32>
    tpu.vector_store %arg10[%c8, %c0_20], %34 {strides = array<i32>} : memref<16x128xf32, #tpu.memory_space<vmem>>, vector<2x128xf32>,
    %36 = vector.extract_strided_slice %5 {offsets = [10, 0], sizes = [2, 128], strides = [1, 1]} : vector<16x128xf32> to vector<2x128xf32>
    %cst_21 = arith.constant dense<0.000000e+00> : vector<2x128xf32>
    %37 = tpu.matmul %34, %10, %cst_21 {dimension_numbers = #tpu.dot_dimension_numbers<[1], [0], [0], [1], [0, 0, 1, 1], [], []>} : vector<2x128xf32>, vector<128x128xf32>, vector<2x128xf32> -> vector<2x128xf32>
    %38 = arith.addf %36, %37 : vector<2x128xf32>
    %39 = math.tanh %38 : vector<2x128xf32>
    %c10 = arith.constant 10 : index
    %c0_22 = arith.constant 0 : index
    %40 = vector.load %arg10[%c10, %c0_22] : memref<16x128xf32, #tpu.memory_space<vmem>>, vector<2x128xf32>
    tpu.vector_store %arg10[%c10, %c0_22], %39 {strides = array<i32>} : memref<16x128xf32, #tpu.memory_space<vmem>>, vector<2x128xf32>,
    %41 = vector.extract_strided_slice %5 {offsets = [12, 0], sizes = [2, 128], strides = [1, 1]} : vector<16x128xf32> to vector<2x128xf32>
    %cst_23 = arith.constant dense<0.000000e+00> : vector<2x128xf32>
    %42 = tpu.matmul %39, %10, %cst_23 {dimension_numbers = #tpu.dot_dimension_numbers<[1], [0], [0], [1], [0, 0, 1, 1], [], []>} : vector<2x128xf32>, vector<128x128xf32>, vector<2x128xf32> -> vector<2x128xf32>
    %43 = arith.addf %41, %42 : vector<2x128xf32>
    %44 = math.tanh %43 : vector<2x128xf32>
    %c12 = arith.constant 12 : index
    %c0_24 = arith.constant 0 : index
    %45 = vector.load %arg10[%c12, %c0_24] : memref<16x128xf32, #tpu.memory_space<vmem>>, vector<2x128xf32>
    tpu.vector_store %arg10[%c12, %c0_24], %44 {strides = array<i32>} : memref<16x128xf32, #tpu.memory_space<vmem>>, vector<2x128xf32>,
    %46 = vector.extract_strided_slice %5 {offsets = [14, 0], sizes = [2, 128], strides = [1, 1]} : vector<16x128xf32> to vector<2x128xf32>
    %cst_25 = arith.constant dense<0.000000e+00> : vector<2x128xf32>
    %47 = tpu.matmul %44, %10, %cst_25 {dimension_numbers = #tpu.dot_dimension_numbers<[1], [0], [0], [1], [0, 0, 1, 1], [], []>} : vector<2x128xf32>, vector<128x128xf32>, vector<2x128xf32> -> vector<2x128xf32>
    %48 = arith.addf %46, %47 : vector<2x128xf32>
    %49 = math.tanh %48 : vector<2x128xf32>
    %c14 = arith.constant 14 : index
    %c0_26 = arith.constant 0 : index
    %50 = vector.load %arg10[%c14, %c0_26] : memref<16x128xf32, #tpu.memory_space<vmem>>, vector<2x128xf32>
    tpu.vector_store %arg10[%c14, %c0_26], %49 {strides = array<i32>} : memref<16x128xf32, #tpu.memory_space<vmem>>, vector<2x128xf32>,
    %c0_27 = arith.constant 0 : index
    %c0_28 = arith.constant 0 : index
    %51 = vector.load %arg9[%c0_27, %c0_28] : memref<2x128xf32, #tpu.memory_space<vmem>>, vector<2x128xf32>
    tpu.vector_store %arg9[%c0_27, %c0_28], %49 {strides = array<i32>} : memref<2x128xf32, #tpu.memory_space<vmem>>, vector<2x128xf32>,
    %c0_29 = arith.constant 0 : index
    %c0_30 = arith.constant 0 : index
    %52 = vector.load %arg10[%c0_29, %c0_30] : memref<16x128xf32, #tpu.memory_space<vmem>>, vector<16x128xf32>
    %c0_31 = arith.constant 0 : index
    %c0_32 = arith.constant 0 : index
    %53 = vector.load %arg6[%c0_31, %c0_32] : memref<128x128xf32, #tpu.memory_space<vmem>>, vector<128x128xf32>
    %cst_33 = arith.constant dense<0.000000e+00> : vector<16x128xf32>
    %54 = tpu.matmul %52, %53, %cst_33 {dimension_numbers = #tpu.dot_dimension_numbers<[1], [0], [0], [1], [0, 0, 1, 1], [], []>} : vector<16x128xf32>, vector<128x128xf32>, vector<16x128xf32> -> vector<16x128xf32>
    %c0_34 = arith.constant 0 : index
    %c0_35 = arith.constant 0 : index
    %55 = vector.load %arg7[%c0_34, %c0_35] : memref<1x128xf32, #tpu.memory_space<vmem>>, vector<1x128xf32>
    %56 = vector.broadcast %55 : vector<1x128xf32> to vector<16x128xf32>
    %57 = arith.addf %54, %56 : vector<16x128xf32>
    %c0_36 = arith.constant 0 : index
    %c0_37 = arith.constant 0 : index
    %58 = vector.load %arg8[%c0_36, %c0_37] : memref<16x128xf32, #tpu.memory_space<vmem>>, vector<16x128xf32>
    tpu.vector_store %arg8[%c0_36, %c0_37], %57 {strides = array<i32>} : memref<16x128xf32, #tpu.memory_space<vmem>>, vector<16x128xf32>,
    return
  }
  func.func @transform_0(%arg0: i32) -> (i32, i32) {
    %c0_i32 = arith.constant 0 : i32
    %c0_i32_0 = arith.constant 0 : i32
    return %arg0, %c0_i32 : i32, i32
  }
  func.func @transform_1(%arg0: i32) -> (i32, i32) {
    %c0_i32 = arith.constant 0 : i32
    %c0_i32_0 = arith.constant 0 : i32
    %c0_i32_1 = arith.constant 0 : i32
    return %c0_i32, %c0_i32_0 : i32, i32
  }
  func.func @transform_2(%arg0: i32) -> (i32, i32) {
    %c0_i32 = arith.constant 0 : i32
    %c0_i32_0 = arith.constant 0 : i32
    %c0_i32_1 = arith.constant 0 : i32
    return %c0_i32, %c0_i32_0 : i32, i32
  }
  func.func @transform_3(%arg0: i32) -> (i32, i32) {
    %c0_i32 = arith.constant 0 : i32
    %c0_i32_0 = arith.constant 0 : i32
    %c0_i32_1 = arith.constant 0 : i32
    return %c0_i32, %c0_i32_0 : i32, i32
  }
  func.func @transform_4(%arg0: i32) -> (i32, i32) {
    %c0_i32 = arith.constant 0 : i32
    %c0_i32_0 = arith.constant 0 : i32
    %c0_i32_1 = arith.constant 0 : i32
    return %c0_i32, %c0_i32_0 : i32, i32
  }
  func.func @transform_5(%arg0: i32) -> (i32, i32) {
    %c0_i32 = arith.constant 0 : i32
    %c0_i32_0 = arith.constant 0 : i32
    %c0_i32_1 = arith.constant 0 : i32
    return %c0_i32, %c0_i32_0 : i32, i32
  }
  func.func @transform_6(%arg0: i32) -> (i32, i32) {
    %c0_i32 = arith.constant 0 : i32
    %c0_i32_0 = arith.constant 0 : i32
    %c0_i32_1 = arith.constant 0 : i32
    return %c0_i32, %c0_i32_0 : i32, i32
  }
  func.func @transform_7(%arg0: i32) -> (i32, i32) {
    %c0_i32 = arith.constant 0 : i32
    %c0_i32_0 = arith.constant 0 : i32
    return %arg0, %c0_i32 : i32, i32
  }
  func.func @transform_8(%arg0: i32) -> (i32, i32) {
    %c0_i32 = arith.constant 0 : i32
    %c0_i32_0 = arith.constant 0 : i32
    %c0_i32_1 = arith.constant 0 : i32
    return %c0_i32, %c0_i32_0 : i32, i32
  }
}

</mosaic_0001>

<llo_original>
// kernel: char_rnn_forward.1
$region0: #{char_rnn_forward.1}
  #allocation0 [shape = 'u32[]', space=smem, size = 0x4, offset = 0x4, fixed_abs, tag = 'smem constant byte address 0x4 - core index']
  #allocation1 [shape = 'u32[144,128]{1,0:T(1,128)}', space=vmem, size = 0x12000, scoped, tag = 'internal scratch']
  #allocation2 [shape = 'f32[16,128]{1,0:T(8,128)}', space=vmem, size = 0x2000, scoped, tag = 'scratch operand']
  %s0 = inlined_call_operand.vmem [shape: f32[16,32], index: 0, kind: input, shape index: {}]
  %s1 = inlined_call_operand.vmem [shape: f32[2,128], index: 1, kind: input, shape index: {}]
  %s2 = inlined_call_operand.vmem [shape: f32[32,128], index: 2, kind: input, shape index: {}]
  %s3 = inlined_call_operand.vmem [shape: f32[128,128], index: 3, kind: input, shape index: {}]
  %s4 = inlined_call_operand.vmem [shape: f32[1,128], index: 4, kind: input, shape index: {}]
  %s5 = inlined_call_operand.vmem [shape: f32[128,128], index: 5, kind: input, shape index: {}]
  %s6 = inlined_call_operand.vmem [shape: f32[1,128], index: 6, kind: input, shape index: {}]
  %s7 = inlined_call_operand.vmem [shape: f32[16,128], index: 7, kind: output, shape index: {0}]
  %s8 = inlined_call_operand.vmem [shape: f32[2,128], index: 8, kind: output, shape index: {1}]
  %9 = xla_tuple %s7, %s8
  %s10 = sld [smem:[#allocation0]]
  $region50: #{char_rnn_forward.1} parent=0
    _
  %s12 = ssub.s32 1, %s10
  %s13 = scalar_select 0, %s12, %s10
  // Predicated region
  $region2: #{char_rnn_forward.1} parent=0 // pred_check
    _
  $region3: #{char_rnn_forward.1} parent=0 // pred_check_branch
    %15 = sbr.rel (0) target = $region5
  $region4: #{char_rnn_forward.1} parent=0 // pred_region
    _
  $region5: #{char_rnn_forward.1} parent=0 // pred_fallthru
    _
  // Predicated region
  $region6: #{char_rnn_forward.1} parent=0 // pred_check
    _
  $region7: #{char_rnn_forward.1} parent=0 // pred_check_branch
    %17 = sbr.rel (0) target = $region9
  $region8: #{char_rnn_forward.1} parent=0 // pred_region
    _
  $region9: #{char_rnn_forward.1} parent=0 // pred_fallthru
    _
  // Predicated region
  $region10: #{char_rnn_forward.1} parent=0 // pred_check
    _
  $region11: #{char_rnn_forward.1} parent=0 // pred_check_branch
    %19 = sbr.rel (0) target = $region13
  $region12: #{char_rnn_forward.1} parent=0 // pred_region
    _
  $region13: #{char_rnn_forward.1} parent=0 // pred_fallthru
    _
  // Predicated region
  $region14: #{char_rnn_forward.1} parent=0 // pred_check
    _
  $region15: #{char_rnn_forward.1} parent=0 // pred_check_branch
    %21 = sbr.rel (0) target = $region17
  $region16: #{char_rnn_forward.1} parent=0 // pred_region
    _
  $region17: #{char_rnn_forward.1} parent=0 // pred_fallthru
    _
  // Predicated region
  $region18: #{char_rnn_forward.1} parent=0 // pred_check
    _
  $region19: #{char_rnn_forward.1} parent=0 // pred_check_branch
    %23 = sbr.rel (0) target = $region21
  $region20: #{char_rnn_forward.1} parent=0 // pred_region
    _
  $region21: #{char_rnn_forward.1} parent=0 // pred_fallthru
    _
  // Predicated region
  $region22: #{char_rnn_forward.1} parent=0 // pred_check
    _
  $region23: #{char_rnn_forward.1} parent=0 // pred_check_branch
    %25 = sbr.rel (0) target = $region25
  $region24: #{char_rnn_forward.1} parent=0 // pred_region
    _
  $region25: #{char_rnn_forward.1} parent=0 // pred_fallthru
    _
  // Predicated region
  $region26: #{char_rnn_forward.1} parent=0 // pred_check
    _
  $region27: #{char_rnn_forward.1} parent=0 // pred_check_branch
    %27 = sbr.rel (0) target = $region29
  $region28: #{char_rnn_forward.1} parent=0 // pred_region
    _
  $region29: #{char_rnn_forward.1} parent=0 // pred_fallthru
    _
  %v28 = vld [vmem:[%s0] sm:$0xff]
  %v29 = vld [vmem:[%s0 + $0x8] sm:$0xff]
  %v30 = vld [vmem:[%s2] sm:$0xff]
  %v31 = vld [vmem:[%s2 + $0x8] sm:$0xff]
  %v32 = vld [vmem:[%s2 + $0x10] sm:$0xff]
  %v33 = vld [vmem:[%s2 + $0x18] sm:$0xff]
  %v34 = vld [vmem:[%s4] sm:$0x1]
  %v36 = vlaneseq
  %v37 = vshrl.u32 %v36, 7
  %v38 = vsub.s32 0, %v37
  %v39 = vrot.slane %v34, %v38
  %vm41 = vcmask 261120
  %v43 = vsel %vm41, %v28, 0
  %v46 = vsel %vm41, %v29, 0
  %48 = vmatprep.subr.mxu0 0.0
  %49 = vmatpush1.msra.mxu0 %v30
  %50 = vmatprep.subr.mxu0 0.0
  %51 = vmatpush1.msra.mxu0 %v31
  %52 = vmatprep.subr.mxu0 0.0
  %53 = vmatpush1.msra.mxu0 %v32
  %54 = vmatprep.subr.mxu0 0.0
  %55 = vmatpush1.msra.mxu0 %v33
  %56 = vmatprep.subr.mxu0 0.0
  %57 = vmatpush1.msra.mxu0 0.0
  %58 = vmatprep.subr.mxu0 0.0
  %59 = vmatpush1.msra.mxu0 0.0
  %60 = vmatprep.subr.mxu0 0.0
  %61 = vmatpush1.msra.mxu0 0.0
  %62 = vmatprep.subr.mxu0 0.0
  %63 = vmatpush1.msra.mxu0 0.0
  %64 = vmatprep.subr.mxu0 0.0
  %65 = vmatpush1.msra.mxu0 0.0
  %66 = vmatprep.subr.mxu0 0.0
  %67 = vmatpush1.msra.mxu0 0.0
  %68 = vmatprep.subr.mxu0 0.0
  %69 = vmatpush1.msra.mxu0 0.0
  %70 = vmatprep.subr.mxu0 0.0
  %71 = vmatpush1.msra.mxu0 0.0
  %72 = vmatprep.subr.mxu0 0.0
  %73 = vmatpush1.msra.mxu0 0.0
  %74 = vmatprep.subr.mxu0 0.0
  %75 = vmatpush1.msra.mxu0 0.0
  %76 = vmatprep.subr.mxu0 0.0
  %77 = vmatpush1.msra.mxu0 0.0
  %78 = vmatprep.subr.mxu0 0.0
  %79 = vmatpush1.msra.mxu0 0.0
  %80 = vmatprep.subr.mxu0 0.0
  %81 = vmatpush1.msra.mxu0 0.0
  %82 = vmatprep.subr.mxu0 0.0
  %83 = vmatpush1.msra.mxu0 0.0
  %84 = vmatprep.subr.mxu0 0.0
  %85 = vmatpush1.msra.mxu0 0.0
  %86 = vmatprep.subr.mxu0 0.0
  %87 = vmatpush1.msra.mxu0 0.0
  %88 = vmatprep.subr.mxu0 0.0
  %89 = vmatpush1.msra.mxu0 0.0
  %90 = vmatprep.subr.mxu0 0.0
  %91 = vmatpush1.msra.mxu0 0.0
  %92 = vmatprep.subr.mxu0 0.0
  %93 = vmatpush1.msra.mxu0 0.0
  %94 = vmatprep.subr.mxu0 0.0
  %95 = vmatpush1.msra.mxu0 0.0
  %96 = vmatprep.subr.mxu0 0.0
  %97 = vmatpush1.msra.mxu0 0.0
  %98 = vmatprep.subr.mxu0 0.0
  %99 = vmatpush1.msra.mxu0 0.0
  %100 = vmatprep.subr.mxu0 0.0
  %101 = vmatpush1.msra.mxu0 0.0
  %102 = vmatprep.subr.mxu0 0.0
  %103 = vmatpush1.msra.mxu0 0.0
  %104 = vmatprep.subr.mxu0 0.0
  %105 = vmatpush1.msra.mxu0 0.0
  %106 = vmatprep.subr.mxu0 0.0
  %107 = vmatpush1.msra.mxu0 0.0
  %108 = vmatprep.subr.mxu0 0.0
  %109 = vmatpush1.msra.mxu0 0.0
  %110 = vmatprep.subr.mxu0 0.0
  %111 = vmatpush1.msra.mxu0 0.0
  %112 = vmatprep.mubr.f32.mxu0 0.0
  %113 = vmatmul.mubr.f32.gmra.mrb[0].mxu0 %v43
  %v114 = vpop.f32.mrb[0].mxu0
  %v115 = vadd.f32 %v39, %v114
  %v116 = vpop.f32.mrb[0].mxu0
  %117 = vmatprep.mubr.f32.mxu0 0.0
  %118 = vmatmul.mubr.f32.gmra.mrb[0].mxu0 %v46
  %v119 = vpop.f32.mrb[0].mxu0
  %v120 = vadd.f32 %v39, %v119
  %v121 = vpop.f32.mrb[0].mxu0
  %122 = vdwg.mxu0
  %p123 = scmp.eq.s32.totalorder 0, 0
  // Predicated region
  $region30: #{char_rnn_forward.1} parent=0 // pred_check
    %p124 = pneg %p123
  $region31: #{char_rnn_forward.1} parent=0 // pred_check_branch
    %126 = sbr.rel (%p124) target = $region33
  $region32: #{char_rnn_forward.1} parent=0 // pred_region
    %v127 = vld [vmem:[%s1] sm:$0x3]
    %128 = vst [vmem:[%s8] sm:$0x3] %v127
  $region33: #{char_rnn_forward.1} parent=0 // pred_fallthru
    _
  %v129 = vld [vmem:[%s8] sm:$0x3]
  %v130 = vld [vmem:[%s3] sm:$0xff]
  %v131 = vld [vmem:[%s3 + $0x8] sm:$0xff]
  %v132 = vld [vmem:[%s3 + $0x10] sm:$0xff]
  %v133 = vld [vmem:[%s3 + $0x18] sm:$0xff]
  %v134 = vld [vmem:[%s3 + $0x20] sm:$0xff]
  %v135 = vld [vmem:[%s3 + $0x28] sm:$0xff]
  %v136 = vld [vmem:[%s3 + $0x30] sm:$0xff]
  %v137 = vld [vmem:[%s3 + $0x38] sm:$0xff]
  %v138 = vld [vmem:[%s3 + $0x40] sm:$0xff]
  %v139 = vld [vmem:[%s3 + $0x48] sm:$0xff]
  %v140 = vld [vmem:[%s3 + $0x50] sm:$0xff]
  %v141 = vld [vmem:[%s3 + $0x58] sm:$0xff]
  %v142 = vld [vmem:[%s3 + $0x60] sm:$0xff]
  %v143 = vld [vmem:[%s3 + $0x68] sm:$0xff]
  %v144 = vld [vmem:[%s3 + $0x70] sm:$0xff]
  %v145 = vld [vmem:[%s3 + $0x78] sm:$0xff]
  %146 = vmatprep.subr.mxu0 0.0
  %147 = vmatpush1.msra.mxu0 %v130
  %148 = vmatprep.subr.mxu0 0.0
  %149 = vmatpush1.msra.mxu0 %v131
  %150 = vmatprep.subr.mxu0 0.0
  %151 = vmatpush1.msra.mxu0 %v132
  %152 = vmatprep.subr.mxu0 0.0
  %153 = vmatpush1.msra.mxu0 %v133
  %154 = vmatprep.subr.mxu0 0.0
  %155 = vmatpush1.msra.mxu0 %v134
  %156 = vmatprep.subr.mxu0 0.0
  %157 = vmatpush1.msra.mxu0 %v135
  %158 = vmatprep.subr.mxu0 0.0
  %159 = vmatpush1.msra.mxu0 %v136
  %160 = vmatprep.subr.mxu0 0.0
  %161 = vmatpush1.msra.mxu0 %v137
  %162 = vmatprep.subr.mxu0 0.0
  %163 = vmatpush1.msra.mxu0 %v138
  %164 = vmatprep.subr.mxu0 0.0
  %165 = vmatpush1.msra.mxu0 %v139
  %166 = vmatprep.subr.mxu0 0.0
  %167 = vmatpush1.msra.mxu0 %v140
  %168 = vmatprep.subr.mxu0 0.0
  %169 = vmatpush1.msra.mxu0 %v141
  %170 = vmatprep.subr.mxu0 0.0
  %171 = vmatpush1.msra.mxu0 %v142
  %172 = vmatprep.subr.mxu0 0.0
  %173 = vmatpush1.msra.mxu0 %v143
  %174 = vmatprep.subr.mxu0 0.0
  %175 = vmatpush1.msra.mxu0 %v144
  %176 = vmatprep.subr.mxu0 0.0
  %177 = vmatpush1.msra.mxu0 %v145
  %178 = vmatprep.subr.mxu0 0.0
  %179 = vmatpush1.msra.mxu0 0.0
  %180 = vmatprep.subr.mxu0 0.0
  %181 = vmatpush1.msra.mxu0 0.0
  %182 = vmatprep.subr.mxu0 0.0
  %183 = vmatpush1.msra.mxu0 0.0
  %184 = vmatprep.subr.mxu0 0.0
  %185 = vmatpush1.msra.mxu0 0.0
  %186 = vmatprep.subr.mxu0 0.0
  %187 = vmatpush1.msra.mxu0 0.0
  %188 = vmatprep.subr.mxu0 0.0
  %189 = vmatpush1.msra.mxu0 0.0
  %190 = vmatprep.subr.mxu0 0.0
  %191 = vmatpush1.msra.mxu0 0.0
  %192 = vmatprep.subr.mxu0 0.0
  %193 = vmatpush1.msra.mxu0 0.0
  %194 = vmatprep.subr.mxu0 0.0
  %195 = vmatpush1.msra.mxu0 0.0
  %196 = vmatprep.subr.mxu0 0.0
  %197 = vmatpush1.msra.mxu0 0.0
  %198 = vmatprep.subr.mxu0 0.0
  %199 = vmatpush1.msra.mxu0 0.0
  %200 = vmatprep.subr.mxu0 0.0
  %201 = vmatpush1.msra.mxu0 0.0
  %202 = vmatprep.subr.mxu0 0.0
  %203 = vmatpush1.msra.mxu0 0.0
  %204 = vmatprep.subr.mxu0 0.0
  %205 = vmatpush1.msra.mxu0 0.0
  %206 = vmatprep.subr.mxu0 0.0
  %207 = vmatpush1.msra.mxu0 0.0
  %208 = vmatprep.subr.mxu0 0.0
  %209 = vmatpush1.msra.mxu0 0.0
  %210 = vmatprep.mubr.f32.mxu0 0.0
  %211 = vmatmul.mubr.f32.gmra.mrb[0].mxu0 %v129
  %v212 = vpop.f32.mrb[0].mxu0
  %v213 = vadd.f32 0.0, %v212
  %v214 = vpop.f32.mrb[0].mxu0
  %215 = vdwg.mxu0
  %v216 = vadd.f32 %v115, %v213
  %v217 = vtanh.pop %v216
  %218 = vst [vmem:[#allocation2] sm:$0x3] %v217
  %219 = vmatprep.subr.mxu0 0.0
  %220 = vmatpush1.msra.mxu0 %v130
  %221 = vmatprep.subr.mxu0 0.0
  %222 = vmatpush1.msra.mxu0 %v131
  %223 = vmatprep.subr.mxu0 0.0
  %224 = vmatpush1.msra.mxu0 %v132
  %225 = vmatprep.subr.mxu0 0.0
  %226 = vmatpush1.msra.mxu0 %v133
  %227 = vmatprep.subr.mxu0 0.0
  %228 = vmatpush1.msra.mxu0 %v134
  %229 = vmatprep.subr.mxu0 0.0
  %230 = vmatpush1.msra.mxu0 %v135
  %231 = vmatprep.subr.mxu0 0.0
  %232 = vmatpush1.msra.mxu0 %v136
  %233 = vmatprep.subr.mxu0 0.0
  %234 = vmatpush1.msra.mxu0 %v137
  %235 = vmatprep.subr.mxu0 0.0
  %236 = vmatpush1.msra.mxu0 %v138
  %237 = vmatprep.subr.mxu0 0.0
  %238 = vmatpush1.msra.mxu0 %v139
  %239 = vmatprep.subr.mxu0 0.0
  %240 = vmatpush1.msra.mxu0 %v140
  %241 = vmatprep.subr.mxu0 0.0
  %242 = vmatpush1.msra.mxu0 %v141
  %243 = vmatprep.subr.mxu0 0.0
  %244 = vmatpush1.msra.mxu0 %v142
  %245 = vmatprep.subr.mxu0 0.0
  %246 = vmatpush1.msra.mxu0 %v143
  %247 = vmatprep.subr.mxu0 0.0
  %248 = vmatpush1.msra.mxu0 %v144
  %249 = vmatprep.subr.mxu0 0.0
  %250 = vmatpush1.msra.mxu0 %v145
  %251 = vmatprep.subr.mxu0 0.0
  %252 = vmatpush1.msra.mxu0 0.0
  %253 = vmatprep.subr.mxu0 0.0
  %254 = vmatpush1.msra.mxu0 0.0
  %255 = vmatprep.subr.mxu0 0.0
  %256 = vmatpush1.msra.mxu0 0.0
  %257 = vmatprep.subr.mxu0 0.0
  %258 = vmatpush1.msra.mxu0 0.0
  %259 = vmatprep.subr.mxu0 0.0
  %260 = vmatpush1.msra.mxu0 0.0
  %261 = vmatprep.subr.mxu0 0.0
  %262 = vmatpush1.msra.mxu0 0.0
  %263 = vmatprep.subr.mxu0 0.0
  %264 = vmatpush1.msra.mxu0 0.0
  %265 = vmatprep.subr.mxu0 0.0
  %266 = vmatpush1.msra.mxu0 0.0
  %267 = vmatprep.subr.mxu0 0.0
  %268 = vmatpush1.msra.mxu0 0.0
  %269 = vmatprep.subr.mxu0 0.0
  %270 = vmatpush1.msra.mxu0 0.0
  %271 = vmatprep.subr.mxu0 0.0
  %272 = vmatpush1.msra.mxu0 0.0
  %273 = vmatprep.subr.mxu0 0.0
  %274 = vmatpush1.msra.mxu0 0.0
  %275 = vmatprep.subr.mxu0 0.0
  %276 = vmatpush1.msra.mxu0 0.0
  %277 = vmatprep.subr.mxu0 0.0
  %278 = vmatpush1.msra.mxu0 0.0
  %279 = vmatprep.subr.mxu0 0.0
  %280 = vmatpush1.msra.mxu0 0.0
  %281 = vmatprep.subr.mxu0 0.0
  %282 = vmatpush1.msra.mxu0 0.0
  %283 = vmatprep.mubr.f32.mxu0 0.0
  %284 = vmatmul.mubr.f32.gmra.mrb[0].mxu0 %v217
  %v285 = vpop.f32.mrb[0].mxu0
  %v286 = vadd.f32 0.0, %v285
  %v287 = vpop.f32.mrb[0].mxu0
  %288 = vdwg.mxu0
  %v290 = vrot.slane %v286, 6
  %v292 = vadd.f32 %v115, %v290
  %v293 = vtanh.pop %v292
  %294 = vst [vmem:[#allocation2] sm:$0xc] %v293
  %v296 = vrot.slane %v293, 2
  %298 = vmatprep.subr.mxu0 0.0
  %299 = vmatpush1.msra.mxu0 %v130
  %300 = vmatprep.subr.mxu0 0.0
  %301 = vmatpush1.msra.mxu0 %v131
  %302 = vmatprep.subr.mxu0 0.0
  %303 = vmatpush1.msra.mxu0 %v132
  %304 = vmatprep.subr.mxu0 0.0
  %305 = vmatpush1.msra.mxu0 %v133
  %306 = vmatprep.subr.mxu0 0.0
  %307 = vmatpush1.msra.mxu0 %v134
  %308 = vmatprep.subr.mxu0 0.0
  %309 = vmatpush1.msra.mxu0 %v135
  %310 = vmatprep.subr.mxu0 0.0
  %311 = vmatpush1.msra.mxu0 %v136
  %312 = vmatprep.subr.mxu0 0.0
  %313 = vmatpush1.msra.mxu0 %v137
  %314 = vmatprep.subr.mxu0 0.0
  %315 = vmatpush1.msra.mxu0 %v138
  %316 = vmatprep.subr.mxu0 0.0
  %317 = vmatpush1.msra.mxu0 %v139
  %318 = vmatprep.subr.mxu0 0.0
  %319 = vmatpush1.msra.mxu0 %v140
  %320 = vmatprep.subr.mxu0 0.0
  %321 = vmatpush1.msra.mxu0 %v141
  %322 = vmatprep.subr.mxu0 0.0
  %323 = vmatpush1.msra.mxu0 %v142
  %324 = vmatprep.subr.mxu0 0.0
  %325 = vmatpush1.msra.mxu0 %v143
  %326 = vmatprep.subr.mxu0 0.0
  %327 = vmatpush1.msra.mxu0 %v144
  %328 = vmatprep.subr.mxu0 0.0
  %329 = vmatpush1.msra.mxu0 %v145
  %330 = vmatprep.subr.mxu0 0.0
  %331 = vmatpush1.msra.mxu0 0.0
  %332 = vmatprep.subr.mxu0 0.0
  %333 = vmatpush1.msra.mxu0 0.0
  %334 = vmatprep.subr.mxu0 0.0
  %335 = vmatpush1.msra.mxu0 0.0
  %336 = vmatprep.subr.mxu0 0.0
  %337 = vmatpush1.msra.mxu0 0.0
  %338 = vmatprep.subr.mxu0 0.0
  %339 = vmatpush1.msra.mxu0 0.0
  %340 = vmatprep.subr.mxu0 0.0
  %341 = vmatpush1.msra.mxu0 0.0
  %342 = vmatprep.subr.mxu0 0.0
  %343 = vmatpush1.msra.mxu0 0.0
  %344 = vmatprep.subr.mxu0 0.0
  %345 = vmatpush1.msra.mxu0 0.0
  %346 = vmatprep.subr.mxu0 0.0
  %347 = vmatpush1.msra.mxu0 0.0
  %348 = vmatprep.subr.mxu0 0.0
  %349 = vmatpush1.msra.mxu0 0.0
  %350 = vmatprep.subr.mxu0 0.0
  %351 = vmatpush1.msra.mxu0 0.0
  %352 = vmatprep.subr.mxu0 0.0
  %353 = vmatpush1.msra.mxu0 0.0
  %354 = vmatprep.subr.mxu0 0.0
  %355 = vmatpush1.msra.mxu0 0.0
  %356 = vmatprep.subr.mxu0 0.0
  %357 = vmatpush1.msra.mxu0 0.0
  %358 = vmatprep.subr.mxu0 0.0
  %359 = vmatpush1.msra.mxu0 0.0
  %360 = vmatprep.subr.mxu0 0.0
  %361 = vmatpush1.msra.mxu0 0.0
  %362 = vmatprep.mubr.f32.mxu0 0.0
  %363 = vmatmul.mubr.f32.gmra.mrb[0].mxu0 %v296
  %v364 = vpop.f32.mrb[0].mxu0
  %v365 = vadd.f32 0.0, %v364
  %v366 = vpop.f32.mrb[0].mxu0
  %367 = vdwg.mxu0
  %v369 = vrot.slane %v365, 4
  %v371 = vadd.f32 %v115, %v369
  %v372 = vtanh.pop %v371
  %373 = vst [vmem:[#allocation2] sm:$0x30] %v372
  %v375 = vrot.slane %v372, 4
  %377 = vmatprep.subr.mxu0 0.0
  %378 = vmatpush1.msra.mxu0 %v130
  %379 = vmatprep.subr.mxu0 0.0
  %380 = vmatpush1.msra.mxu0 %v131
  %381 = vmatprep.subr.mxu0 0.0
  %382 = vmatpush1.msra.mxu0 %v132
  %383 = vmatprep.subr.mxu0 0.0
  %384 = vmatpush1.msra.mxu0 %v133
  %385 = vmatprep.subr.mxu0 0.0
  %386 = vmatpush1.msra.mxu0 %v134
  %387 = vmatprep.subr.mxu0 0.0
  %388 = vmatpush1.msra.mxu0 %v135
  %389 = vmatprep.subr.mxu0 0.0
  %390 = vmatpush1.msra.mxu0 %v136
  %391 = vmatprep.subr.mxu0 0.0
  %392 = vmatpush1.msra.mxu0 %v137
  %393 = vmatprep.subr.mxu0 0.0
  %394 = vmatpush1.msra.mxu0 %v138
  %395 = vmatprep.subr.mxu0 0.0
  %396 = vmatpush1.msra.mxu0 %v139
  %397 = vmatprep.subr.mxu0 0.0
  %398 = vmatpush1.msra.mxu0 %v140
  %399 = vmatprep.subr.mxu0 0.0
  %400 = vmatpush1.msra.mxu0 %v141
  %401 = vmatprep.subr.mxu0 0.0
  %402 = vmatpush1.msra.mxu0 %v142
  %403 = vmatprep.subr.mxu0 0.0
  %404 = vmatpush1.msra.mxu0 %v143
  %405 = vmatprep.subr.mxu0 0.0
  %406 = vmatpush1.msra.mxu0 %v144
  %407 = vmatprep.subr.mxu0 0.0
  %408 = vmatpush1.msra.mxu0 %v145
  %409 = vmatprep.subr.mxu0 0.0
  %410 = vmatpush1.msra.mxu0 0.0
  %411 = vmatprep.subr.mxu0 0.0
  %412 = vmatpush1.msra.mxu0 0.0
  %413 = vmatprep.subr.mxu0 0.0
  %414 = vmatpush1.msra.mxu0 0.0
  %415 = vmatprep.subr.mxu0 0.0
  %416 = vmatpush1.msra.mxu0 0.0
  %417 = vmatprep.subr.mxu0 0.0
  %418 = vmatpush1.msra.mxu0 0.0
  %419 = vmatprep.subr.mxu0 0.0
  %420 = vmatpush1.msra.mxu0 0.0
  %421 = vmatprep.subr.mxu0 0.0
  %422 = vmatpush1.msra.mxu0 0.0
  %423 = vmatprep.subr.mxu0 0.0
  %424 = vmatpush1.msra.mxu0 0.0
  %425 = vmatprep.subr.mxu0 0.0
  %426 = vmatpush1.msra.mxu0 0.0
  %427 = vmatprep.subr.mxu0 0.0
  %428 = vmatpush1.msra.mxu0 0.0
  %429 = vmatprep.subr.mxu0 0.0
  %430 = vmatpush1.msra.mxu0 0.0
  %431 = vmatprep.subr.mxu0 0.0
  %432 = vmatpush1.msra.mxu0 0.0
  %433 = vmatprep.subr.mxu0 0.0
  %434 = vmatpush1.msra.mxu0 0.0
  %435 = vmatprep.subr.mxu0 0.0
  %436 = vmatpush1.msra.mxu0 0.0
  %437 = vmatprep.subr.mxu0 0.0
  %438 = vmatpush1.msra.mxu0 0.0
  %439 = vmatprep.subr.mxu0 0.0
  %440 = vmatpush1.msra.mxu0 0.0
  %441 = vmatprep.mubr.f32.mxu0 0.0
  %442 = vmatmul.mubr.f32.gmra.mrb[0].mxu0 %v375
  %v443 = vpop.f32.mrb[0].mxu0
  %v444 = vadd.f32 0.0, %v443
  %v445 = vpop.f32.mrb[0].mxu0
  %446 = vdwg.mxu0
  %v448 = vrot.slane %v444, 2
  %v450 = vadd.f32 %v115, %v448
  %v451 = vtanh.pop %v450
  %452 = vst [vmem:[#allocation2] sm:$0xc0] %v451
  %v454 = vrot.slane %v451, 6
  %456 = vmatprep.subr.mxu0 0.0
  %457 = vmatpush1.msra.mxu0 %v130
  %458 = vmatprep.subr.mxu0 0.0
  %459 = vmatpush1.msra.mxu0 %v131
  %460 = vmatprep.subr.mxu0 0.0
  %461 = vmatpush1.msra.mxu0 %v132
  %462 = vmatprep.subr.mxu0 0.0
  %463 = vmatpush1.msra.mxu0 %v133
  %464 = vmatprep.subr.mxu0 0.0
  %465 = vmatpush1.msra.mxu0 %v134
  %466 = vmatprep.subr.mxu0 0.0
  %467 = vmatpush1.msra.mxu0 %v135
  %468 = vmatprep.subr.mxu0 0.0
  %469 = vmatpush1.msra.mxu0 %v136
  %470 = vmatprep.subr.mxu0 0.0
  %471 = vmatpush1.msra.mxu0 %v137
  %472 = vmatprep.subr.mxu0 0.0
  %473 = vmatpush1.msra.mxu0 %v138
  %474 = vmatprep.subr.mxu0 0.0
  %475 = vmatpush1.msra.mxu0 %v139
  %476 = vmatprep.subr.mxu0 0.0
  %477 = vmatpush1.msra.mxu0 %v140
  %478 = vmatprep.subr.mxu0 0.0
  %479 = vmatpush1.msra.mxu0 %v141
  %480 = vmatprep.subr.mxu0 0.0
  %481 = vmatpush1.msra.mxu0 %v142
  %482 = vmatprep.subr.mxu0 0.0
  %483 = vmatpush1.msra.mxu0 %v143
  %484 = vmatprep.subr.mxu0 0.0
  %485 = vmatpush1.msra.mxu0 %v144
  %486 = vmatprep.subr.mxu0 0.0
  %487 = vmatpush1.msra.mxu0 %v145
  %488 = vmatprep.subr.mxu0 0.0
  %489 = vmatpush1.msra.mxu0 0.0
  %490 = vmatprep.subr.mxu0 0.0
  %491 = vmatpush1.msra.mxu0 0.0
  %492 = vmatprep.subr.mxu0 0.0
  %493 = vmatpush1.msra.mxu0 0.0
  %494 = vmatprep.subr.mxu0 0.0
  %495 = vmatpush1.msra.mxu0 0.0
  %496 = vmatprep.subr.mxu0 0.0
  %497 = vmatpush1.msra.mxu0 0.0
  %498 = vmatprep.subr.mxu0 0.0
  %499 = vmatpush1.msra.mxu0 0.0
  %500 = vmatprep.subr.mxu0 0.0
  %501 = vmatpush1.msra.mxu0 0.0
  %502 = vmatprep.subr.mxu0 0.0
  %503 = vmatpush1.msra.mxu0 0.0
  %504 = vmatprep.subr.mxu0 0.0
  %505 = vmatpush1.msra.mxu0 0.0
  %506 = vmatprep.subr.mxu0 0.0
  %507 = vmatpush1.msra.mxu0 0.0
  %508 = vmatprep.subr.mxu0 0.0
  %509 = vmatpush1.msra.mxu0 0.0
  %510 = vmatprep.subr.mxu0 0.0
  %511 = vmatpush1.msra.mxu0 0.0
  %512 = vmatprep.subr.mxu0 0.0
  %513 = vmatpush1.msra.mxu0 0.0
  %514 = vmatprep.subr.mxu0 0.0
  %515 = vmatpush1.msra.mxu0 0.0
  %516 = vmatprep.subr.mxu0 0.0
  %517 = vmatpush1.msra.mxu0 0.0
  %518 = vmatprep.subr.mxu0 0.0
  %519 = vmatpush1.msra.mxu0 0.0
  %520 = vmatprep.mubr.f32.mxu0 0.0
  %521 = vmatmul.mubr.f32.gmra.mrb[0].mxu0 %v454
  %v522 = vpop.f32.mrb[0].mxu0
  %v523 = vadd.f32 0.0, %v522
  %v524 = vpop.f32.mrb[0].mxu0
  %525 = vdwg.mxu0
  %v526 = vadd.f32 %v120, %v523
  %v527 = vtanh.pop %v526
  %528 = vst [vmem:[#allocation2 + $0x8] sm:$0x3] %v527
  %529 = vmatprep.subr.mxu0 0.0
  %530 = vmatpush1.msra.mxu0 %v130
  %531 = vmatprep.subr.mxu0 0.0
  %532 = vmatpush1.msra.mxu0 %v131
  %533 = vmatprep.subr.mxu0 0.0
  %534 = vmatpush1.msra.mxu0 %v132
  %535 = vmatprep.subr.mxu0 0.0
  %536 = vmatpush1.msra.mxu0 %v133
  %537 = vmatprep.subr.mxu0 0.0
  %538 = vmatpush1.msra.mxu0 %v134
  %539 = vmatprep.subr.mxu0 0.0
  %540 = vmatpush1.msra.mxu0 %v135
  %541 = vmatprep.subr.mxu0 0.0
  %542 = vmatpush1.msra.mxu0 %v136
  %543 = vmatprep.subr.mxu0 0.0
  %544 = vmatpush1.msra.mxu0 %v137
  %545 = vmatprep.subr.mxu0 0.0
  %546 = vmatpush1.msra.mxu0 %v138
  %547 = vmatprep.subr.mxu0 0.0
  %548 = vmatpush1.msra.mxu0 %v139
  %549 = vmatprep.subr.mxu0 0.0
  %550 = vmatpush1.msra.mxu0 %v140
  %551 = vmatprep.subr.mxu0 0.0
  %552 = vmatpush1.msra.mxu0 %v141
  %553 = vmatprep.subr.mxu0 0.0
  %554 = vmatpush1.msra.mxu0 %v142
  %555 = vmatprep.subr.mxu0 0.0
  %556 = vmatpush1.msra.mxu0 %v143
  %557 = vmatprep.subr.mxu0 0.0
  %558 = vmatpush1.msra.mxu0 %v144
  %559 = vmatprep.subr.mxu0 0.0
  %560 = vmatpush1.msra.mxu0 %v145
  %561 = vmatprep.subr.mxu0 0.0
  %562 = vmatpush1.msra.mxu0 0.0
  %563 = vmatprep.subr.mxu0 0.0
  %564 = vmatpush1.msra.mxu0 0.0
  %565 = vmatprep.subr.mxu0 0.0
  %566 = vmatpush1.msra.mxu0 0.0
  %567 = vmatprep.subr.mxu0 0.0
  %568 = vmatpush1.msra.mxu0 0.0
  %569 = vmatprep.subr.mxu0 0.0
  %570 = vmatpush1.msra.mxu0 0.0
  %571 = vmatprep.subr.mxu0 0.0
  %572 = vmatpush1.msra.mxu0 0.0
  %573 = vmatprep.subr.mxu0 0.0
  %574 = vmatpush1.msra.mxu0 0.0
  %575 = vmatprep.subr.mxu0 0.0
  %576 = vmatpush1.msra.mxu0 0.0
  %577 = vmatprep.subr.mxu0 0.0
  %578 = vmatpush1.msra.mxu0 0.0
  %579 = vmatprep.subr.mxu0 0.0
  %580 = vmatpush1.msra.mxu0 0.0
  %581 = vmatprep.subr.mxu0 0.0
  %582 = vmatpush1.msra.mxu0 0.0
  %583 = vmatprep.subr.mxu0 0.0
  %584 = vmatpush1.msra.mxu0 0.0
  %585 = vmatprep.subr.mxu0 0.0
  %586 = vmatpush1.msra.mxu0 0.0
  %587 = vmatprep.subr.mxu0 0.0
  %588 = vmatpush1.msra.mxu0 0.0
  %589 = vmatprep.subr.mxu0 0.0
  %590 = vmatpush1.msra.mxu0 0.0
  %591 = vmatprep.subr.mxu0 0.0
  %592 = vmatpush1.msra.mxu0 0.0
  %593 = vmatprep.mubr.f32.mxu0 0.0
  %594 = vmatmul.mubr.f32.gmra.mrb[0].mxu0 %v527
  %v595 = vpop.f32.mrb[0].mxu0
  %v596 = vadd.f32 0.0, %v595
  %v597 = vpop.f32.mrb[0].mxu0
  %598 = vdwg.mxu0
  %v600 = vrot.slane %v596, 6
  %v602 = vadd.f32 %v120, %v600
  %v603 = vtanh.pop %v602
  %604 = vst [vmem:[#allocation2 + $0x8] sm:$0xc] %v603
  %v606 = vrot.slane %v603, 2
  %608 = vmatprep.subr.mxu0 0.0
  %609 = vmatpush1.msra.mxu0 %v130
  %610 = vmatprep.subr.mxu0 0.0
  %611 = vmatpush1.msra.mxu0 %v131
  %612 = vmatprep.subr.mxu0 0.0
  %613 = vmatpush1.msra.mxu0 %v132
  %614 = vmatprep.subr.mxu0 0.0
  %615 = vmatpush1.msra.mxu0 %v133
  %616 = vmatprep.subr.mxu0 0.0
  %617 = vmatpush1.msra.mxu0 %v134
  %618 = vmatprep.subr.mxu0 0.0
  %619 = vmatpush1.msra.mxu0 %v135
  %620 = vmatprep.subr.mxu0 0.0
  %621 = vmatpush1.msra.mxu0 %v136
  %622 = vmatprep.subr.mxu0 0.0
  %623 = vmatpush1.msra.mxu0 %v137
  %624 = vmatprep.subr.mxu0 0.0
  %625 = vmatpush1.msra.mxu0 %v138
  %626 = vmatprep.subr.mxu0 0.0
  %627 = vmatpush1.msra.mxu0 %v139
  %628 = vmatprep.subr.mxu0 0.0
  %629 = vmatpush1.msra.mxu0 %v140
  %630 = vmatprep.subr.mxu0 0.0
  %631 = vmatpush1.msra.mxu0 %v141
  %632 = vmatprep.subr.mxu0 0.0
  %633 = vmatpush1.msra.mxu0 %v142
  %634 = vmatprep.subr.mxu0 0.0
  %635 = vmatpush1.msra.mxu0 %v143
  %636 = vmatprep.subr.mxu0 0.0
  %637 = vmatpush1.msra.mxu0 %v144
  %638 = vmatprep.subr.mxu0 0.0
  %639 = vmatpush1.msra.mxu0 %v145
  %640 = vmatprep.subr.mxu0 0.0
  %641 = vmatpush1.msra.mxu0 0.0
  %642 = vmatprep.subr.mxu0 0.0
  %643 = vmatpush1.msra.mxu0 0.0
  %644 = vmatprep.subr.mxu0 0.0
  %645 = vmatpush1.msra.mxu0 0.0
  %646 = vmatprep.subr.mxu0 0.0
  %647 = vmatpush1.msra.mxu0 0.0
  %648 = vmatprep.subr.mxu0 0.0
  %649 = vmatpush1.msra.mxu0 0.0
  %650 = vmatprep.subr.mxu0 0.0
  %651 = vmatpush1.msra.mxu0 0.0
  %652 = vmatprep.subr.mxu0 0.0
  %653 = vmatpush1.msra.mxu0 0.0
  %654 = vmatprep.subr.mxu0 0.0
  %655 = vmatpush1.msra.mxu0 0.0
  %656 = vmatprep.subr.mxu0 0.0
  %657 = vmatpush1.msra.mxu0 0.0
  %658 = vmatprep.subr.mxu0 0.0
  %659 = vmatpush1.msra.mxu0 0.0
  %660 = vmatprep.subr.mxu0 0.0
  %661 = vmatpush1.msra.mxu0 0.0
  %662 = vmatprep.subr.mxu0 0.0
  %663 = vmatpush1.msra.mxu0 0.0
  %664 = vmatprep.subr.mxu0 0.0
  %665 = vmatpush1.msra.mxu0 0.0
  %666 = vmatprep.subr.mxu0 0.0
  %667 = vmatpush1.msra.mxu0 0.0
  %668 = vmatprep.subr.mxu0 0.0
  %669 = vmatpush1.msra.mxu0 0.0
  %670 = vmatprep.subr.mxu0 0.0
  %671 = vmatpush1.msra.mxu0 0.0
  %672 = vmatprep.mubr.f32.mxu0 0.0
  %673 = vmatmul.mubr.f32.gmra.mrb[0].mxu0 %v606
  %v674 = vpop.f32.mrb[0].mxu0
  %v675 = vadd.f32 0.0, %v674
  %v676 = vpop.f32.mrb[0].mxu0
  %677 = vdwg.mxu0
  %v679 = vrot.slane %v675, 4
  %v681 = vadd.f32 %v120, %v679
  %v682 = vtanh.pop %v681
  %683 = vst [vmem:[#allocation2 + $0x8] sm:$0x30] %v682
  %v685 = vrot.slane %v682, 4
  %687 = vmatprep.subr.mxu0 0.0
  %688 = vmatpush1.msra.mxu0 %v130
  %689 = vmatprep.subr.mxu0 0.0
  %690 = vmatpush1.msra.mxu0 %v131
  %691 = vmatprep.subr.mxu0 0.0
  %692 = vmatpush1.msra.mxu0 %v132
  %693 = vmatprep.subr.mxu0 0.0
  %694 = vmatpush1.msra.mxu0 %v133
  %695 = vmatprep.subr.mxu0 0.0
  %696 = vmatpush1.msra.mxu0 %v134
  %697 = vmatprep.subr.mxu0 0.0
  %698 = vmatpush1.msra.mxu0 %v135
  %699 = vmatprep.subr.mxu0 0.0
  %700 = vmatpush1.msra.mxu0 %v136
  %701 = vmatprep.subr.mxu0 0.0
  %702 = vmatpush1.msra.mxu0 %v137
  %703 = vmatprep.subr.mxu0 0.0
  %704 = vmatpush1.msra.mxu0 %v138
  %705 = vmatprep.subr.mxu0 0.0
  %706 = vmatpush1.msra.mxu0 %v139
  %707 = vmatprep.subr.mxu0 0.0
  %708 = vmatpush1.msra.mxu0 %v140
  %709 = vmatprep.subr.mxu0 0.0
  %710 = vmatpush1.msra.mxu0 %v141
  %711 = vmatprep.subr.mxu0 0.0
  %712 = vmatpush1.msra.mxu0 %v142
  %713 = vmatprep.subr.mxu0 0.0
  %714 = vmatpush1.msra.mxu0 %v143
  %715 = vmatprep.subr.mxu0 0.0
  %716 = vmatpush1.msra.mxu0 %v144
  %717 = vmatprep.subr.mxu0 0.0
  %718 = vmatpush1.msra.mxu0 %v145
  %719 = vmatprep.subr.mxu0 0.0
  %720 = vmatpush1.msra.mxu0 0.0
  %721 = vmatprep.subr.mxu0 0.0
  %722 = vmatpush1.msra.mxu0 0.0
  %723 = vmatprep.subr.mxu0 0.0
  %724 = vmatpush1.msra.mxu0 0.0
  %725 = vmatprep.subr.mxu0 0.0
  %726 = vmatpush1.msra.mxu0 0.0
  %727 = vmatprep.subr.mxu0 0.0
  %728 = vmatpush1.msra.mxu0 0.0
  %729 = vmatprep.subr.mxu0 0.0
  %730 = vmatpush1.msra.mxu0 0.0
  %731 = vmatprep.subr.mxu0 0.0
  %732 = vmatpush1.msra.mxu0 0.0
  %733 = vmatprep.subr.mxu0 0.0
  %734 = vmatpush1.msra.mxu0 0.0
  %735 = vmatprep.subr.mxu0 0.0
  %736 = vmatpush1.msra.mxu0 0.0
  %737 = vmatprep.subr.mxu0 0.0
  %738 = vmatpush1.msra.mxu0 0.0
  %739 = vmatprep.subr.mxu0 0.0
  %740 = vmatpush1.msra.mxu0 0.0
  %741 = vmatprep.subr.mxu0 0.0
  %742 = vmatpush1.msra.mxu0 0.0
  %743 = vmatprep.subr.mxu0 0.0
  %744 = vmatpush1.msra.mxu0 0.0
  %745 = vmatprep.subr.mxu0 0.0
  %746 = vmatpush1.msra.mxu0 0.0
  %747 = vmatprep.subr.mxu0 0.0
  %748 = vmatpush1.msra.mxu0 0.0
  %749 = vmatprep.subr.mxu0 0.0
  %750 = vmatpush1.msra.mxu0 0.0
  %751 = vmatprep.mubr.f32.mxu0 0.0
  %752 = vmatmul.mubr.f32.gmra.mrb[0].mxu0 %v685
  %v753 = vpop.f32.mrb[0].mxu0
  %v754 = vadd.f32 0.0, %v753
  %v755 = vpop.f32.mrb[0].mxu0
  %756 = vdwg.mxu0
  %v758 = vrot.slane %v754, 2
  %v760 = vadd.f32 %v120, %v758
  %v761 = vtanh.pop %v760
  %762 = vst [vmem:[#allocation2 + $0x8] sm:$0xc0] %v761
  %763 = vst [vmem:[%s8 - $0x6] sm:$0xc0] %v761
  %v764 = vld [vmem:[#allocation2] sm:$0xff]
  %v765 = vld [vmem:[#allocation2 + $0x8] sm:$0xff]
  %v766 = vld [vmem:[%s5] sm:$0xff]
  %v767 = vld [vmem:[%s5 + $0x8] sm:$0xff]
  %v768 = vld [vmem:[%s5 + $0x10] sm:$0xff]
  %v769 = vld [vmem:[%s5 + $0x18] sm:$0xff]
  %v770 = vld [vmem:[%s5 + $0x20] sm:$0xff]
  %v771 = vld [vmem:[%s5 + $0x28] sm:$0xff]
  %v772 = vld [vmem:[%s5 + $0x30] sm:$0xff]
  %v773 = vld [vmem:[%s5 + $0x38] sm:$0xff]
  %v774 = vld [vmem:[%s5 + $0x40] sm:$0xff]
  %v775 = vld [vmem:[%s5 + $0x48] sm:$0xff]
  %v776 = vld [vmem:[%s5 + $0x50] sm:$0xff]
  %v777 = vld [vmem:[%s5 + $0x58] sm:$0xff]
  %v778 = vld [vmem:[%s5 + $0x60] sm:$0xff]
  %v779 = vld [vmem:[%s5 + $0x68] sm:$0xff]
  %v780 = vld [vmem:[%s5 + $0x70] sm:$0xff]
  %v781 = vld [vmem:[%s5 + $0x78] sm:$0xff]
  %v782 = vld [vmem:[%s6] sm:$0x1]
  %v784 = vlaneseq
  %v785 = vshrl.u32 %v784, 7
  %v786 = vsub.s32 0, %v785
  %v787 = vrot.slane %v782, %v786
  %789 = vmatprep.subr.mxu0 0.0
  %790 = vmatpush1.msra.mxu0 %v766
  %791 = vmatprep.subr.mxu0 0.0
  %792 = vmatpush1.msra.mxu0 %v767
  %793 = vmatprep.subr.mxu0 0.0
  %794 = vmatpush1.msra.mxu0 %v768
  %795 = vmatprep.subr.mxu0 0.0
  %796 = vmatpush1.msra.mxu0 %v769
  %797 = vmatprep.subr.mxu0 0.0
  %798 = vmatpush1.msra.mxu0 %v770
  %799 = vmatprep.subr.mxu0 0.0
  %800 = vmatpush1.msra.mxu0 %v771
  %801 = vmatprep.subr.mxu0 0.0
  %802 = vmatpush1.msra.mxu0 %v772
  %803 = vmatprep.subr.mxu0 0.0
  %804 = vmatpush1.msra.mxu0 %v773
  %805 = vmatprep.subr.mxu0 0.0
  %806 = vmatpush1.msra.mxu0 %v774
  %807 = vmatprep.subr.mxu0 0.0
  %808 = vmatpush1.msra.mxu0 %v775
  %809 = vmatprep.subr.mxu0 0.0
  %810 = vmatpush1.msra.mxu0 %v776
  %811 = vmatprep.subr.mxu0 0.0
  %812 = vmatpush1.msra.mxu0 %v777
  %813 = vmatprep.subr.mxu0 0.0
  %814 = vmatpush1.msra.mxu0 %v778
  %815 = vmatprep.subr.mxu0 0.0
  %816 = vmatpush1.msra.mxu0 %v779
  %817 = vmatprep.subr.mxu0 0.0
  %818 = vmatpush1.msra.mxu0 %v780
  %819 = vmatprep.subr.mxu0 0.0
  %820 = vmatpush1.msra.mxu0 %v781
  %821 = vmatprep.subr.mxu0 0.0
  %822 = vmatpush1.msra.mxu0 0.0
  %823 = vmatprep.subr.mxu0 0.0
  %824 = vmatpush1.msra.mxu0 0.0
  %825 = vmatprep.subr.mxu0 0.0
  %826 = vmatpush1.msra.mxu0 0.0
  %827 = vmatprep.subr.mxu0 0.0
  %828 = vmatpush1.msra.mxu0 0.0
  %829 = vmatprep.subr.mxu0 0.0
  %830 = vmatpush1.msra.mxu0 0.0
  %831 = vmatprep.subr.mxu0 0.0
  %832 = vmatpush1.msra.mxu0 0.0
  %833 = vmatprep.subr.mxu0 0.0
  %834 = vmatpush1.msra.mxu0 0.0
  %835 = vmatprep.subr.mxu0 0.0
  %836 = vmatpush1.msra.mxu0 0.0
  %837 = vmatprep.subr.mxu0 0.0
  %838 = vmatpush1.msra.mxu0 0.0
  %839 = vmatprep.subr.mxu0 0.0
  %840 = vmatpush1.msra.mxu0 0.0
  %841 = vmatprep.subr.mxu0 0.0
  %842 = vmatpush1.msra.mxu0 0.0
  %843 = vmatprep.subr.mxu0 0.0
  %844 = vmatpush1.msra.mxu0 0.0
  %845 = vmatprep.subr.mxu0 0.0
  %846 = vmatpush1.msra.mxu0 0.0
  %847 = vmatprep.subr.mxu0 0.0
  %848 = vmatpush1.msra.mxu0 0.0
  %849 = vmatprep.subr.mxu0 0.0
  %850 = vmatpush1.msra.mxu0 0.0
  %851 = vmatprep.subr.mxu0 0.0
  %852 = vmatpush1.msra.mxu0 0.0
  %853 = vmatprep.mubr.f32.mxu0 0.0
  %854 = vmatmul.mubr.f32.gmra.mrb[0].mxu0 %v764
  %v855 = vpop.f32.mrb[0].mxu0
  %v856 = vadd.f32 %v787, %v855
  %v857 = vpop.f32.mrb[0].mxu0
  %858 = vmatprep.mubr.f32.mxu0 0.0
  %859 = vmatmul.mubr.f32.gmra.mrb[0].mxu0 %v765
  %v860 = vpop.f32.mrb[0].mxu0
  %v861 = vadd.f32 %v787, %v860
  %v862 = vpop.f32.mrb[0].mxu0
  %863 = vdwg.mxu0
  %864 = vst [vmem:[%s7] sm:$0xff] %v856
  %865 = vst [vmem:[%s7 + $0x8] sm:$0xff] %v861
  // Predicated region
  $region34: #{char_rnn_forward.1} parent=0 // pred_check
    _
  $region35: #{char_rnn_forward.1} parent=0 // pred_check_branch
    %867 = sbr.rel (0) target = $region37
  $region36: #{char_rnn_forward.1} parent=0 // pred_region
    _
  $region37: #{char_rnn_forward.1} parent=0 // pred_fallthru
    _
  // Predicated region
  $region38: #{char_rnn_forward.1} parent=0 // pred_check
    _
  $region39: #{char_rnn_forward.1} parent=0 // pred_check_branch
    %869 = sbr.rel (0) target = $region41
  $region40: #{char_rnn_forward.1} parent=0 // pred_region
    _
  $region41: #{char_rnn_forward.1} parent=0 // pred_fallthru
    _
  // Predicated region
  $region42: #{char_rnn_forward.1} parent=0 // pred_check
    _
  $region43: #{char_rnn_forward.1} parent=0 // pred_check_branch
    %871 = sbr.rel (0) target = $region45
  $region44: #{char_rnn_forward.1} parent=0 // pred_region
    _
  $region45: #{char_rnn_forward.1} parent=0 // pred_fallthru
    _
  // Predicated region
  $region46: #{char_rnn_forward.1} parent=0 // pred_check
    _
  $region47: #{char_rnn_forward.1} parent=0 // pred_check_branch
    %873 = sbr.rel (0) target = $region49
  $region48: #{char_rnn_forward.1} parent=0 // pred_region
    _
  $region49: #{char_rnn_forward.1} parent=0 // pred_fallthru
    _

</llo_original>
